<compile_context>
chip_gen: v5e
topology: v5e:2x2
jax: 0.10.0
libtpu: 0.0.40
codegen_flags: <defaults>
</compile_context>

<pallas_src>
import math

import jax
import jax.numpy as jnp
from jax.experimental import pallas as pl
from jax.experimental.pallas import tpu as pltpu

_MiB = 1024 * 1024


def _crelu_kernel(x_ref, out_ref):
    # x_ref:   (Ta, Ts, Tl)      input tile
    # out_ref: (Ta, 2, Ts, Tl)   output tile; half 0 = relu(x), half 1 = relu(-x)
    x = x_ref[...]
    out_ref[:, 0, :, :] = jnp.maximum(x, 0)
    out_ref[:, 1, :, :] = jnp.maximum(-x, 0)


def _device_budgets():
    """(target input-tile bytes per grid step, scoped-VMEM limit) per TPU generation."""
    try:
        vmem_cap = pltpu.get_tpu_info().vmem_capacity_bytes
    except Exception:
        vmem_cap = 0
    if vmem_cap >= 96 * _MiB:
        # v5e / v6e: 128 MiB physical VMEM -> bigger tiles, generous scoped limit.
        return 4 * _MiB, 64 * _MiB
    if vmem_cap > 0:
        # v7x: 64 MiB physical per TensorCore -> keep total residency well under it.
        return 4 * _MiB, 40 * _MiB
    # Hardware query failed: conservative defaults that are safe on every chip.
    return 2 * _MiB, 32 * _MiB


def _sublane_min(itemsize: int) -> int:
    return {4: 8, 2: 16, 1: 32}.get(itemsize, 8)


def _split_features(f: int, itemsize: int, target_bytes: int):
    """Split flattened feature count F = C*R into (S, L) with L a lane-dense 128-multiple."""
    smin = _sublane_min(itemsize)
    if f > 0 and f % 128 == 0:
        # Largest L = 128*k dividing F such that S = F/L >= smin and an smin-row
        # slab of L lanes still fits the per-step tile budget.
        k_cap = max(1, min(f // 128, target_bytes // (smin * itemsize * 128)))
        for k in range(k_cap, 0, -1):
            lane = 128 * k
            if f % lane == 0 and f // lane >= smin:
                return f // lane, lane
        # Small F: no split reaches smin sublanes; maximize sublane fill instead.
        return f // 128, 128
    # F not a multiple of 128: keep it on the lane axis (masked edges unavoidable).
    return 1, f


def _choose_tiles(a: int, s: int, l: int, itemsize: int, target_bytes: int):
    """Pick (Ta, Ts, Tl) respecting the (8, 128) block rule within the tile budget."""
    smin = _sublane_min(itemsize)

    # Lane tile: full extent when it fits; otherwise even-ish 128-multiple chunks
    # (avoids a tiny remainder block that still pays the full per-step cost).
    if l * itemsize <= target_bytes or l <= 128:
        tl = l
    else:
        n_blocks = pl.cdiv(l * itemsize, target_bytes)
        tl = max(128, pl.cdiv(pl.cdiv(l, n_blocks), 128) * 128)
        if tl >= l:
            tl = l

    # Sublane tile: full extent when it fits; otherwise a multiple of the sublane tile.
    row_bytes = max(1, tl * itemsize)
    max_rows = max(1, target_bytes // row_bytes)
    if max_rows >= s:
        ts = s
    else:
        ts = min(s, max(smin, (max_rows // smin) * smin))

    # Leading (row) tile: grow toward the per-step budget.
    slab_bytes = max(1, ts * tl * itemsize)
    ta = max(1, min(a, target_bytes // slab_bytes))
    return ta, ts, tl


def crelu(x: jax.Array, dim: int = 1) -> jax.Array:
    """CReLU(x) = concat(relu(x), relu(-x)) along `dim` (default 1)."""
    shape = x.shape
    dim = dim % x.ndim

    a = math.prod(shape[:dim])        # leading dims
    c = shape[dim]                    # concat dim
    r = math.prod(shape[dim + 1:])    # trailing dims
    f = c * r                         # flattened feature slab per output half
    itemsize = jnp.dtype(x.dtype).itemsize

    target_bytes, vmem_limit = _device_budgets()
    s, l = _split_features(f, itemsize, target_bytes)
    ta, ts, tl = _choose_tiles(a, s, l, itemsize, target_bytes)

    grid = (pl.cdiv(a, ta), pl.cdiv(s, ts), pl.cdiv(l, tl))
    if grid[0] * grid[1] * grid[2] == 1:
        # Guarantee >= 2 blocks along a "parallel" axis so the v7x megacore
        # (2 TensorCores) gets a non-degenerate split; neutral on v5e/v6e.
        smin = _sublane_min(itemsize)
        if a >= 2:
            ta = pl.cdiv(a, 2)
        elif s >= 2 * smin:
            ts = pl.cdiv(pl.cdiv(s, 2), smin) * smin
        grid = (pl.cdiv(a, ta), pl.cdiv(s, ts), pl.cdiv(l, tl))

    x3 = x.reshape(a, s, l)

    out4 = pl.pallas_call(
        _crelu_kernel,
        out_shape=jax.ShapeDtypeStruct((a, 2, s, l), x.dtype),
        grid=grid,
        in_specs=[pl.BlockSpec((ta, ts, tl), lambda i, j, k: (i, j, k))],
        out_specs=pl.BlockSpec((ta, 2, ts, tl), lambda i, j, k: (i, 0, j, k)),
        compiler_params=pltpu.CompilerParams(
            dimension_semantics=("parallel", "parallel", "parallel"),
            vmem_limit_bytes=vmem_limit,
        ),
        cost_estimate=pl.CostEstimate(
            flops=2 * a * f,
            transcendentals=0,
            bytes_accessed=3 * a * f * itemsize,
        ),
    )(x3)

    out_shape = shape[:dim] + (2 * c,) + shape[dim + 1:]
    return out4.reshape(out_shape)


class CReLU:
    """CReLU activation module (mirrors the PyTorch nn.Module; no parameters)."""

    def __call__(self, x: jax.Array, dim: int = 1) -> jax.Array:
        return crelu(x, dim)


def _reference(x: jax.Array, dim: int = 1) -> jax.Array:
    return jnp.concatenate([jnp.maximum(x, 0), jnp.maximum(-x, 0)], axis=dim)


if __name__ == "__main__":
    key = jax.random.PRNGKey(0)
    module = CReLU()

    # 1) Small NCHW input consistent with an Atari-style conv feature map
    #    (C=4 previously underfilled sublanes; the (S, L) re-split fixes that).
    x = jax.random.normal(key, (2, 4, 16, 16), dtype=jnp.float32)
    out = jax.block_until_ready(module(x, dim=1))
    ref = _reference(x, dim=1)
    assert out.shape == (2, 8, 16, 16), out.shape
    assert out.dtype == x.dtype
    assert jnp.allclose(out, ref), "mismatch vs reference (small NCHW)"

    # 2) Larger map that exercises the lane-dense re-split + multi-step grid path.
    x2 = jax.random.normal(jax.random.PRNGKey(0), (4, 32, 64, 64), dtype=jnp.float32)
    out2 = jax.block_until_ready(module(x2, dim=1))
    ref2 = _reference(x2, dim=1)
    assert out2.shape == (4, 64, 64, 64), out2.shape
    assert jnp.allclose(out2, ref2), "mismatch vs reference (tiled grid)"

    # 3) Awkward shape / non-default dim: F not a multiple of 128 (fallback path).
    x3 = jax.random.normal(jax.random.PRNGKey(0), (2, 5, 7, 9), dtype=jnp.float32)
    out3 = jax.block_until_ready(module(x3, dim=2))
    ref3 = _reference(x3, dim=2)
    assert out3.shape == (2, 5, 14, 9), out3.shape
    assert jnp.allclose(out3, ref3), "mismatch vs reference (non-128 fallback)"

    print("KERNEL_OK")
</pallas_src>

<mosaic_0001>
module attributes {stable_mosaic.version = 11 : i64} {
  func.func @_crelu_kernel(%arg0: i32, %arg1: i32, %arg2: i32, %arg3: memref<1x8x128xf32, #tpu.memory_space<vmem>>, %arg4: memref<1x2x8x128xf32, #tpu.memory_space<vmem>>) attributes {dimension_semantics = [#tpu.dimension_semantics<parallel>, #tpu.dimension_semantics<parallel>, #tpu.dimension_semantics<parallel>], iteration_bounds = array<i64: 2, 1, 1>, scalar_prefetch = 0 : i64, scratch_operands = 0 : i64, tpu.core_type = #tpu.core_type<tc>, window_params = [{transform_indices = @transform_0, window_bounds = array<i64: 1, 8, 128>}, {transform_indices = @transform_1, window_bounds = array<i64: 1, 2, 8, 128>}]} {
    %c0 = arith.constant 0 : index
    %c0_0 = arith.constant 0 : index
    %c0_1 = arith.constant 0 : index
    %0 = vector.load %arg3[%c0, %c0_0, %c0_1] : memref<1x8x128xf32, #tpu.memory_space<vmem>>, vector<1x8x128xf32>
    %cst = arith.constant 0.000000e+00 : f32
    %1 = vector.broadcast %cst : f32 to vector<1x8x128xf32>
    %2 = arith.maximumf %0, %1 : vector<1x8x128xf32>
    %c0_2 = arith.constant 0 : index
    %c0_3 = arith.constant 0 : index
    %c0_4 = arith.constant 0 : index
    %c0_5 = arith.constant 0 : index
    %3 = vector.load %arg4[%c0_2, %c0_3, %c0_4, %c0_5] : memref<1x2x8x128xf32, #tpu.memory_space<vmem>>, vector<1x1x8x128xf32>
    %4 = vector.shape_cast %3 : vector<1x1x8x128xf32> to vector<1x8x128xf32>
    %5 = vector.shape_cast %2 : vector<1x8x128xf32> to vector<1x1x8x128xf32>
    tpu.vector_store %arg4[%c0_2, %c0_3, %c0_4, %c0_5], %5 {strides = array<i32>} : memref<1x2x8x128xf32, #tpu.memory_space<vmem>>, vector<1x1x8x128xf32>,
    %cst_6 = arith.constant 0.000000e+00 : f32
    %6 = vector.broadcast %cst_6 : f32 to vector<1x8x128xf32>
    %7 = arith.subf %6, %0 : vector<1x8x128xf32>
    %cst_7 = arith.constant 0.000000e+00 : f32
    %8 = vector.broadcast %cst_7 : f32 to vector<1x8x128xf32>
    %9 = arith.maximumf %7, %8 : vector<1x8x128xf32>
    %c0_8 = arith.constant 0 : index
    %c1 = arith.constant 1 : index
    %c0_9 = arith.constant 0 : index
    %c0_10 = arith.constant 0 : index
    %10 = vector.load %arg4[%c0_8, %c1, %c0_9, %c0_10] : memref<1x2x8x128xf32, #tpu.memory_space<vmem>>, vector<1x1x8x128xf32>
    %11 = vector.shape_cast %10 : vector<1x1x8x128xf32> to vector<1x8x128xf32>
    %12 = vector.shape_cast %9 : vector<1x8x128xf32> to vector<1x1x8x128xf32>
    tpu.vector_store %arg4[%c0_8, %c1, %c0_9, %c0_10], %12 {strides = array<i32>} : memref<1x2x8x128xf32, #tpu.memory_space<vmem>>, vector<1x1x8x128xf32>,
    return
  }
  func.func @transform_0(%arg0: i32, %arg1: i32, %arg2: i32) -> (i32, i32, i32) {
    %c0_i32 = arith.constant 0 : i32
    return %arg0, %arg1, %arg2 : i32, i32, i32
  }
  func.func @transform_1(%arg0: i32, %arg1: i32, %arg2: i32) -> (i32, i32, i32, i32) {
    %c0_i32 = arith.constant 0 : i32
    %c0_i32_0 = arith.constant 0 : i32
    return %arg0, %c0_i32, %arg1, %arg2 : i32, i32, i32, i32
  }
}

</mosaic_0001>

<llo_original>
// kernel: tpu_custom_call.1
$region0: #{tpu_custom_call.1}
  #allocation0 [shape = 'u32[]', space=smem, size = 0x4, offset = 0x4, fixed_abs, tag = 'smem constant byte address 0x4 - core index']
  #allocation1 [shape = 'u32[72,128]{1,0:T(1,128)}', space=vmem, size = 0x9000, scoped, tag = 'internal scratch']
  %s0 = inlined_call_operand.hbm [shape: f32[2,8,128], index: 0, kind: input, shape index: {}]
  %s1 = inlined_call_operand.hbm [shape: f32[2,2,8,128], index: 1, kind: output, shape index: {}]
  %s2 = sld [smem:[#allocation0]]
  $region41: #{tpu_custom_call.1} parent=0
    _
  %s4 = ssub.s32 1, %s2
  %s5 = scalar_select 0, %s4, %s2
  $region1: #{tpu_custom_call.1} parent=0
    #allocation2 [shape = 'u8[8192]{0}', space=vmem, size = 0x2000, scoped, tag = 'input window, operand 0']
    #allocation3 [shape = 's32[2]{0}', space=sflag, size = 0x8, scoped, tag = 'scoped memory for tpu_custom_call.1']
    #allocation4 [shape = 's32[2]{0}', space=sflag, size = 0x8, scoped, tag = 'scoped memory for tpu_custom_call.1']
    #allocation5 [shape = 'u8[16384]{0}', space=vmem, size = 0x4000, scoped, tag = 'output window, operand 0']
    %6 = vsyncpa [#allocation3], 0
    %s7 = scalar_lea.sflag [#allocation3], 1
    %8 = vsyncpa %s7, 0
    %9 = vsyncpa [#allocation4], 0
    %s10 = scalar_lea.sflag [#allocation4], 1
    %11 = vsyncpa %s10, 0
    loop: start=0, step=1, limit=4
    $region2: #{tpu_custom_call.1} parent=1 // loop_pre_header
      _
    $region3: #{tpu_custom_call.1} parent=1 // loop_header
      %s13 = sphi 0, %s17
      %p14 = scmp.ge.s32.totalorder %s13, 4
      %s20 = sphi 0, %s39
      %s21 = sphi 0, %s35
      %s22 = sphi 0, %s31
      %s23 = sphi 0, %s20
      %s24 = sphi 0, %s21
      %s25 = sphi 0, %s22
      %s26 = sphi 0, %s23
      %s27 = sphi 0, %s24
      %s28 = sphi 0, %s25
      %s46 = sphi 0, %s48
      %s49 = sphi 0, %s46
      %s50 = sphi 0, %s49
      %s66 = sphi 0, %s50
      %s76 = sphi 0, %s78
      %s79 = sphi 0, %s76
      %s80 = sphi 0, %s79
      %s96 = sphi 0, %s80
    $region4: #{tpu_custom_call.1} parent=1 // loop_header_branch
      %16 = sbr.rel (%p14) target = $region8
    $region5: #{tpu_custom_call.1} parent=1 // loop_body
      %s18 = ssub.s32 %s13, 1
      %s19 = ssub.s32 %s13, 2
      %s29 = sadd.s32 1, %s22
      %p30 = scmp.ge.s32.totalorder %s29, 1
      %s31 = scalar_select %p30, 0, %s29
      %s32 = sadd.s32 1, %s21
      %s33 = scalar_select %p30, %s32, %s21
      %p34 = scmp.ge.s32.totalorder %s33, 1
      %s35 = scalar_select %p34, 0, %s33
      %s36 = sadd.s32 1, %s20
      %s37 = scalar_select %p34, %s36, %s20
      %p38 = scmp.ge.s32.totalorder %s37, 2
      %s39 = scalar_select %p38, 0, %s37
      %s40 = ssub.s32 %s20, %s39
      %s41 = ssub.s32 %s21, %s35
      %s42 = sor.u32 %s40, %s41
      %s43 = ssub.s32 %s22, %s31
      %s44 = sor.u32 %s42, %s43
      %p45 = scmp.eq.s32.totalorder %s44, 0
      %s47 = sadd.s32 %s46, 1
      %s48 = scalar_select %p45, %s46, %s47
      %p51 = pneg %p45
      %p52 = scmp.eq.s32.totalorder %s13, 1
      %p53 = por %p51, %p52
      %p54 = scmp.ne.s32.totalorder %s46, %s49
      %p55 = scmp.eq.s32.totalorder %s13, 0
      %p56 = por %p54, %p55
      %p57 = scmp.ne.s32.totalorder %s46, %s49
      %p58 = scmp.eq.s32.totalorder %s18, 1
      %p59 = por %p57, %p58
      %p60 = scmp.ne.s32.totalorder %s49, %s50
      %p61 = scmp.eq.s32.totalorder %s18, 0
      %p62 = por %p60, %p61
      %p63 = scmp.ne.s32.totalorder %s49, %s50
      %p64 = scmp.eq.s32.totalorder %s19, 1
      %p65 = por %p63, %p64
      %p67 = scmp.ne.s32.totalorder %s50, %s66
      %p68 = scmp.eq.s32.totalorder %s19, 0
      %p69 = por %p67, %p68
      %s70 = ssub.s32 %s20, %s39
      %s71 = ssub.s32 %s21, %s35
      %s72 = sor.u32 %s70, %s71
      %s73 = ssub.s32 %s22, %s31
      %s74 = sor.u32 %s72, %s73
      %p75 = scmp.eq.s32.totalorder %s74, 0
      %s77 = sadd.s32 %s76, 1
      %s78 = scalar_select %p75, %s76, %s77
      %p81 = pneg %p75
      %p82 = scmp.eq.s32.totalorder %s13, 1
      %p83 = por %p81, %p82
      %p84 = scmp.ne.s32.totalorder %s76, %s79
      %p85 = scmp.eq.s32.totalorder %s13, 0
      %p86 = por %p84, %p85
      %p87 = scmp.ne.s32.totalorder %s76, %s79
      %p88 = scmp.eq.s32.totalorder %s18, 1
      %p89 = por %p87, %p88
      %p90 = scmp.ne.s32.totalorder %s79, %s80
      %p91 = scmp.eq.s32.totalorder %s18, 0
      %p92 = por %p90, %p91
      %p93 = scmp.ne.s32.totalorder %s79, %s80
      %p94 = scmp.eq.s32.totalorder %s19, 1
      %p95 = por %p93, %p94
      %p97 = scmp.ne.s32.totalorder %s80, %s96
      %p98 = scmp.eq.s32.totalorder %s19, 0
      %p99 = por %p97, %p98
      %p100 = scmp.le.s32.totalorder 1, %s13
      %p101 = scmp.lt.s32.totalorder %s13, 3
      %p102 = pnand %p100, %p101
      %p103 = pneg %p102
      // Predicated region
      $region9: #{tpu_custom_call.1} parent=5 // pred_check
        _
      $region10: #{tpu_custom_call.1} parent=5 // pred_check_branch
        %105 = sbr.rel (%p102) target = $region12
      $region11: #{tpu_custom_call.1} parent=5 // pred_region
        %s106 = ssub.s32 %s13, 1
      $region12: #{tpu_custom_call.1} parent=5 // pred_fallthru
        _
      %p107 = scmp.lt.s32.totalorder %s13, 2
      // Predicated region
      $region13: #{tpu_custom_call.1} parent=5 // pred_check
        %p108 = pneg %p107
      $region14: #{tpu_custom_call.1} parent=5 // pred_check_branch
        %110 = sbr.rel (%p108) target = $region16
      $region15: #{tpu_custom_call.1} parent=5 // pred_region
        // Predicated region
        $region17: #{tpu_custom_call.1} parent=15 // pred_check
          %p111 = pneg %p56
        $region18: #{tpu_custom_call.1} parent=15 // pred_check_branch
          %113 = sbr.rel (%p111) target = $region20
        $region19: #{tpu_custom_call.1} parent=15 // pred_region
          %s114 = sand.u32 %s46, 1
          %s115 = scalar_lea.sflag [#allocation3], %s114
          %s116 = sand.u32 %s46, 1
          %s117 = smul.addr %s116, 8
          %s118 = scalar_lea.vmem [#allocation2], %s117
          %120 = vsyncadd %s115, 0
          %s121 = sadd.s32 %s22, %s21
          %s122 = sadd.s32 %s121, %s20
          %s123 = smul.addr %s122, 8
          %s124 = scalar_lea.hbm %s0, %s123
          %s126 = sshll.u32 %s124, 4
          %s127 = int_to_ptr.hbm [resolvable:$true] %s126
          %s128 = sshll.u32 %s118, 4
          %s129 = int_to_ptr.vmem [resolvable:$true] %s128
          %131 = dma.hbm_to_vmem [thread:$0]  %s127, 128, %s129, %s115
        $region20: #{tpu_custom_call.1} parent=15 // pred_fallthru
          _
      $region16: #{tpu_custom_call.1} parent=5 // pred_fallthru
        _
      %p132 = scmp.le.s32.totalorder 1, %s13
      %p133 = scmp.lt.s32.totalorder %s13, 3
      %p134 = pnand %p132, %p133
      %p135 = pneg %p134
      // Predicated region
      $region21: #{tpu_custom_call.1} parent=5 // pred_check
        _
      $region22: #{tpu_custom_call.1} parent=5 // pred_check_branch
        %137 = sbr.rel (%p134) target = $region24
      $region23: #{tpu_custom_call.1} parent=5 // pred_region
        %s138 = ssub.s32 %s13, 1
        %s139 = sand.u32 %s49, 1
        %s140 = scalar_lea.sflag [#allocation3], %s139
        %s141 = sand.u32 %s49, 1
        %s142 = smul.addr %s141, 8
        %s143 = scalar_lea.vmem [#allocation2], %s142
        // Predicated region
        $region25: #{tpu_custom_call.1} parent=23 // pred_check
          %p144 = pneg %p62
        $region26: #{tpu_custom_call.1} parent=23 // pred_check_branch
          %146 = sbr.rel (%p144) target = $region28
        $region27: #{tpu_custom_call.1} parent=23 // pred_region
          %148 = dma.done %s140, 128
        $region28: #{tpu_custom_call.1} parent=23 // pred_fallthru
          _
        %s149 = sand.u32 %s49, 1
        %s150 = scalar_lea.sflag [#allocation3], %s149
        %s151 = sand.u32 %s49, 1
        %s152 = smul.addr %s151, 8
        %s153 = scalar_lea.vmem [#allocation2], %s152
        %p154 = pneg %p62
        %p155 = pneg %p59
        %p156 = pneg %p92
        %p157 = pneg %p89
        %s158 = sand.u32 %s79, 1
        %s159 = scalar_lea.sflag [#allocation4], %s158
        %s160 = sand.u32 %s79, 1
        %s161 = smul.addr %s160, 16
        %s162 = scalar_lea.vmem [#allocation5], %s161
        %v163 = vld [vmem:[%s143] sm:$0xff]
        %v164 = vmax.f32 %v163, 0.0
        %165 = vst [vmem:[%s162] sm:$0xff] %v164
        %v166 = vsub.f32 0.0, %v163
        %v167 = vmax.f32 %v166, 0.0
        %s168 = scalar_lea.vmem %s162, 8 [#allocation5]
        %169 = vst [vmem:[%s168] sm:$0xff] %v167
        %s170 = sand.u32 %s79, 1
        %s171 = scalar_lea.sflag [#allocation4], %s170
        %s172 = sand.u32 %s79, 1
        %s173 = smul.addr %s172, 16
        %s174 = scalar_lea.vmem [#allocation5], %s173
        // Predicated region
        $region29: #{tpu_custom_call.1} parent=23 // pred_check
          %p175 = pneg %p89
        $region30: #{tpu_custom_call.1} parent=23 // pred_check_branch
          %177 = sbr.rel (%p175) target = $region32
        $region31: #{tpu_custom_call.1} parent=23 // pred_region
          %179 = vsyncadd %s171, 0
          %s180 = sadd.s32 %s25, %s24
          %s181 = smul.addr %s23, 2
          %s182 = sadd.s32 %s180, %s181
          %s183 = smul.addr %s182, 8
          %s184 = scalar_lea.hbm %s1, %s183
          %s185 = sshll.u32 %s174, 4
          %s186 = int_to_ptr.vmem [resolvable:$true] %s185
          %s187 = sshll.u32 %s184, 4
          %s188 = int_to_ptr.hbm [resolvable:$true] %s187
          %193 = dma.vmem_to_hbm [thread:$0]  %s186, 256, %s188, %s171, 128, 128, 8
        $region32: #{tpu_custom_call.1} parent=23 // pred_fallthru
          _
      $region24: #{tpu_custom_call.1} parent=5 // pred_fallthru
        _
      %p194 = scmp.le.s32.totalorder 2, %s13
      // Predicated region
      $region33: #{tpu_custom_call.1} parent=5 // pred_check
        %p195 = pneg %p194
      $region34: #{tpu_custom_call.1} parent=5 // pred_check_branch
        %197 = sbr.rel (%p195) target = $region36
      $region35: #{tpu_custom_call.1} parent=5 // pred_region
        %s198 = ssub.s32 %s13, 2
        // Predicated region
        $region37: #{tpu_custom_call.1} parent=35 // pred_check
          %p199 = pneg %p95
        $region38: #{tpu_custom_call.1} parent=35 // pred_check_branch
          %201 = sbr.rel (%p199) target = $region40
        $region39: #{tpu_custom_call.1} parent=35 // pred_region
          %s202 = sand.u32 %s80, 1
          %s203 = scalar_lea.sflag [#allocation4], %s202
          %s204 = sand.u32 %s80, 1
          %s205 = smul.addr %s204, 16
          %s206 = scalar_lea.vmem [#allocation5], %s205
          %208 = dma.done %s203, 256
        $region40: #{tpu_custom_call.1} parent=35 // pred_fallthru
          _
      $region36: #{tpu_custom_call.1} parent=5 // pred_fallthru
        _
    $region6: #{tpu_custom_call.1} parent=1 // loop_footer
      %s17 = sadd.s32 1, %s13
    $region7: #{tpu_custom_call.1} parent=1 // loop_footer_branch
      %12 = sbr.rel target = $region3
    $region8: #{tpu_custom_call.1} parent=1 // loop_exit
      _
    %209 = vsyncpa [#allocation3], 1
    %s210 = scalar_lea.sflag [#allocation3], 1
    %211 = vsyncpa %s210, 1
    %212 = vsyncpa [#allocation4], 1
    %s213 = scalar_lea.sflag [#allocation4], 1
    %214 = vsyncpa %s213, 1

</llo_original>
